<compile_context>
chip_gen: v5e
topology: v5e:2x2
jax: 0.10.0
libtpu: 0.0.40
codegen_flags: <defaults>
</compile_context>

<pallas_src>
import jax
import jax.numpy as jnp
from jax.experimental import pallas as pl
from jax.experimental.pallas import tpu as pltpu


# ----------------------------------------------------------------------------
# Kernels
# ----------------------------------------------------------------------------
def _ffn_residual_resident_kernel(x_ref, w1_ref, b1_ref, w2_ref, b2_ref, o_ref):
    """Resident-weight path. One (tm, d_model) row tile:
       o = relu(x @ w1 + b1) @ w2 + b2 + x."""
    x = x_ref[...]
    x_mm = x.astype(w1_ref.dtype)              # no-op unless weights downcast
    h = jnp.dot(x_mm, w1_ref[...], preferred_element_type=jnp.float32)
    h = jnp.maximum(h + b1_ref[...].astype(jnp.float32), 0.0)      # fc1 + ReLU
    y = jnp.dot(h.astype(w2_ref.dtype), w2_ref[...],
                preferred_element_type=jnp.float32)                 # fc2
    # residual + fc2 bias folded at the end: no extra f32 copy of x live
    # across the two MXU dots.
    o_ref[...] = (y + b2_ref[...].astype(jnp.float32)
                  + x.astype(jnp.float32)).astype(o_ref.dtype)


def _ffn_residual_streamed_kernel(x_ref, w1_ref, b1_ref, w2_ref, b2_ref, o_ref,
                                  acc_ref):
    """Streamed-weight path. grid = (M tiles, d_ff tiles); d_ff axis is the
    reduction (last, "arbitrary").  Weights are streamed per d_ff chunk and
    double-buffered by BlockSpec; partial fc2 products accumulate in f32."""
    k = pl.program_id(1)
    x = x_ref[...]

    @pl.when(k == 0)
    def _():                                    # residual + fc2 bias added once
        acc_ref[...] = x.astype(jnp.float32) + b2_ref[...].astype(jnp.float32)

    x_mm = x.astype(w1_ref.dtype)
    h = jnp.dot(x_mm, w1_ref[...], preferred_element_type=jnp.float32)
    h = jnp.maximum(h + b1_ref[...].astype(jnp.float32), 0.0)
    acc_ref[...] += jnp.dot(h.astype(w2_ref.dtype), w2_ref[...],
                            preferred_element_type=jnp.float32)

    @pl.when(k == pl.num_programs(1) - 1)
    def _():
        o_ref[...] = acc_ref[...].astype(o_ref.dtype)


# ----------------------------------------------------------------------------
# Host-side helpers
# ----------------------------------------------------------------------------
def _sublane_multiple(dtype):
    """Minimum M alignment so packed sub-32-bit vregs aren't relayouted."""
    itemsize = jnp.dtype(dtype).itemsize
    if itemsize >= 4:
        return 8
    if itemsize == 2:
        return 16
    return 32


def _vmem_capacity_bytes():
    try:
        return int(pltpu.get_tpu_info().vmem_capacity_bytes)
    except Exception:
        return 64 * 1024 * 1024          # conservative: v7x-sized VMEM


def _largest_divisor_chunk(d_ff, target):
    """Largest divisor of d_ff that is <= target, preferring multiples of 128."""
    best = None
    for c in range(min(int(target), d_ff), 0, -1):
        if d_ff % c == 0:
            if c % 128 == 0:
                return c
            if best is None:
                best = c
    return best if best is not None else d_ff


# ----------------------------------------------------------------------------
# Wrapper
# ----------------------------------------------------------------------------
def residual_ffn(x, w1, b1, w2, b2, *, tm=512, tk_target=2048,
                 compute_dtype=None, force_streamed=None):
    """out = fc2(relu(fc1(x))) + x   (ResidualConnectionLayer with FFN sub-layer)

    x:  [batch, seq, d_model];  w1: [d_model, d_ff];  b1: [d_ff];
    w2: [d_ff, d_model];        b2: [d_model].

    compute_dtype: optionally downcast weights (e.g. jnp.bfloat16) for ~3x MXU
        throughput and half the weight VMEM/HBM traffic; accumulation stays f32.
    force_streamed: None = auto (based on VMEM budget), True/False = override.
    """
    batch, seq, d_model = x.shape
    d_ff = w1.shape[1]
    m = batch * seq
    out_dtype = x.dtype

    if compute_dtype is not None:
        w1 = w1.astype(compute_dtype)
        w2 = w2.astype(compute_dtype)
        b1 = b1.astype(compute_dtype)

    x2d = x.reshape(m, d_model)
    b1_2d = b1.reshape(1, d_ff)
    b2_2d = b2.reshape(1, d_model)

    # ---- M tiling: dtype-aware sublane alignment, MXU-aligned when large.
    sub = _sublane_multiple(x.dtype)
    tm = max(sub, min(int(tm), m))
    if tm >= 256:
        tm = (tm // 256) * 256            # 2x256^2 MXU (v6e / v7x)
    elif tm >= 128:
        tm = (tm // 128) * 128            # 4x128^2 MXU (v5e)
    else:
        tm = ((tm + sub - 1) // sub) * sub
    # Keep >= 4 grid steps on large inputs so the "parallel" M axis can shard
    # across both v7x TensorCores and still pipeline.
    if m >= 4 * 256 and m // tm < 4:
        tm = max(256, ((m // 4) // 256) * 256)

    grid_m = pl.cdiv(m, tm)
    m_pad = grid_m * tm
    if m_pad != m:
        x2d = jnp.pad(x2d, ((0, m_pad - m), (0, 0)))

    # ---- VMEM budgeting (generation-aware).
    vmem_cap = _vmem_capacity_bytes()
    vmem_cap_usable = vmem_cap - 8 * 1024 * 1024   # compiler scratch headroom

    x_item = jnp.dtype(x.dtype).itemsize
    w_bytes = int(w1.nbytes + w2.nbytes + b1_2d.nbytes + b2_2d.nbytes)  # 1 buffer
    io_tile_bytes = 4 * tm * d_model * x_item      # x + out, double-buffered
    resident_bytes = (w_bytes + io_tile_bytes
                      + tm * d_ff * 4              # f32 fc1 intermediate
                      + tm * d_model * 4)          # f32 fc2 result

    if force_streamed is None:
        use_streamed = resident_bytes > int(0.9 * vmem_cap_usable)
    else:
        use_streamed = bool(force_streamed)

    tk = n_k = None
    if use_streamed:
        tk = _largest_divisor_chunk(d_ff, min(int(tk_target), d_ff))
        n_k = d_ff // tk
        if n_k <= 1:                       # streaming buys nothing -> resident
            use_streamed = False

    if use_streamed:
        budget = (2 * d_model * tk * jnp.dtype(w1.dtype).itemsize   # w1 stream
                  + 2 * tk * d_model * jnp.dtype(w2.dtype).itemsize  # w2 stream
                  + 2 * tk * jnp.dtype(b1.dtype).itemsize            # b1 stream
                  + d_model * jnp.dtype(b2.dtype).itemsize           # b2 resident
                  + io_tile_bytes
                  + tm * tk * 4                                      # f32 fc1 chunk
                  + tm * d_model * 4)                                # f32 accumulator
    else:
        budget = resident_bytes
    vmem_limit = int(min(vmem_cap_usable,
                         max(32 * 1024 * 1024, int(1.25 * budget))))

    # ---- Advisory cost estimate for XLA's scheduler.
    cost = pl.CostEstimate(
        flops=4 * m * d_model * d_ff + 2 * m * (d_ff + 2 * d_model),
        transcendentals=0,
        bytes_accessed=int(2 * m * d_model * x_item + w_bytes))

    def _const_spec(block_shape, index_map, single_buffer):
        # Constant index_map -> data never changes across grid steps; with
        # Buffered(1) it is kept single-buffered (halves weight VMEM).
        if single_buffer:
            return pl.BlockSpec(block_shape, index_map,
                                pipeline_mode=pl.Buffered(1))
        return pl.BlockSpec(block_shape, index_map)

    def run(single_buffer_weights):
        if not use_streamed:
            grid = (grid_m,)
            in_specs = [
                pl.BlockSpec((tm, d_model), lambda i: (i, 0)),        # x tile
                _const_spec((d_model, d_ff), lambda i: (0, 0),
                            single_buffer_weights),                   # w1
                _const_spec((1, d_ff), lambda i: (0, 0),
                            single_buffer_weights),                   # b1
                _const_spec((d_ff, d_model), lambda i: (0, 0),
                            single_buffer_weights),                   # w2
                _const_spec((1, d_model), lambda i: (0, 0),
                            single_buffer_weights),                   # b2
            ]
            out_specs = pl.BlockSpec((tm, d_model), lambda i: (i, 0))
            scratch = ()
            kernel = _ffn_residual_resident_kernel
            dims = ("parallel",)
        else:
            grid = (grid_m, n_k)          # d_ff reduction axis last, arbitrary
            in_specs = [
                pl.BlockSpec((tm, d_model), lambda i, k: (i, 0)),     # x tile
                pl.BlockSpec((d_model, tk), lambda i, k: (0, k)),     # w1 chunk
                pl.BlockSpec((1, tk), lambda i, k: (0, k)),           # b1 chunk
                pl.BlockSpec((tk, d_model), lambda i, k: (k, 0)),     # w2 chunk
                _const_spec((1, d_model), lambda i, k: (0, 0),
                            single_buffer_weights),                   # b2
            ]
            out_specs = pl.BlockSpec((tm, d_model), lambda i, k: (i, 0))
            scratch = (pltpu.VMEM((tm, d_model), jnp.float32),)
            kernel = _ffn_residual_streamed_kernel
            dims = ("parallel", "arbitrary")

        return pl.pallas_call(
            kernel,
            out_shape=jax.ShapeDtypeStruct((m_pad, d_model), out_dtype),
            grid_spec=pltpu.PrefetchScalarGridSpec(
                num_scalar_prefetch=0,
                grid=grid,
                in_specs=in_specs,
                out_specs=out_specs,
                scratch_shapes=scratch),
            compiler_params=pltpu.CompilerParams(
                dimension_semantics=dims,
                vmem_limit_bytes=vmem_limit),
            cost_estimate=cost,
        )(x2d, w1, b1_2d, w2, b2_2d)

    try:
        out2d = run(single_buffer_weights=True)
    except Exception:
        # Older jax builds may reject pipeline_mode=Buffered(1); retry with the
        # default (double-buffered) weight specs.
        out2d = run(single_buffer_weights=False)

    if m_pad != m:
        out2d = out2d[:m]
    return out2d.reshape(batch, seq, d_model)


# ----------------------------------------------------------------------------
# Reference + test
# ----------------------------------------------------------------------------
def reference(x, w1, b1, w2, b2):
    h = jnp.maximum(jnp.einsum("bsd,df->bsf", x, w1) + b1, 0.0)
    y = jnp.einsum("bsf,fd->bsd", h, w2) + b2
    return y + x   # residual connection


def _make_inputs(key, batch, seq, d_model, d_ff):
    kx, kw1, kb1, kw2, kb2 = jax.random.split(key, 5)
    x = jax.random.normal(kx, (batch, seq, d_model), dtype=jnp.float32)
    lim1 = 1.0 / d_model ** 0.5
    lim2 = 1.0 / d_ff ** 0.5
    w1 = jax.random.uniform(kw1, (d_model, d_ff), jnp.float32, -lim1, lim1)
    b1 = jax.random.uniform(kb1, (d_ff,), jnp.float32, -lim1, lim1)
    w2 = jax.random.uniform(kw2, (d_ff, d_model), jnp.float32, -lim2, lim2)
    b2 = jax.random.uniform(kb2, (d_model,), jnp.float32, -lim2, lim2)
    return x, w1, b1, w2, b2


if __name__ == "__main__":
    key = jax.random.PRNGKey(0)
    k1, k2 = jax.random.split(key, 2)

    # --- Test 1: resident-weight path (small d_ff). ---
    x, w1, b1, w2, b2 = _make_inputs(k1, batch=2, seq=8, d_model=32, d_ff=64)
    out = residual_ffn(x, w1, b1, w2, b2, tm=8)
    out = jax.block_until_ready(out)
    ref = reference(x, w1, b1, w2, b2)
    assert out.shape == (2, 8, 32)
    assert jnp.allclose(out, ref, atol=1e-5, rtol=1e-5)

    # --- Test 2: streamed-weight path (grid-k d_ff reduction), forced. ---
    x2, w1_2, b1_2, w2_2, b2_2 = _make_inputs(k2, batch=2, seq=8,
                                              d_model=32, d_ff=256)
    out2 = residual_ffn(x2, w1_2, b1_2, w2_2, b2_2,
                        tm=8, tk_target=128, force_streamed=True)
    out2 = jax.block_until_ready(out2)
    ref2 = reference(x2, w1_2, b1_2, w2_2, b2_2)
    assert out2.shape == (2, 8, 32)
    assert jnp.allclose(out2, ref2, atol=1e-5, rtol=1e-5)

    # TODO(synk): the PyTorch module takes an arbitrary `sub_layer` callable;
    # only the concrete FFN sub-layer from Transformer_mini.py is fused here.
    print("KERNEL_OK")
</pallas_src>

<mosaic_0001>
module attributes {stable_mosaic.version = 11 : i64} {
  func.func @_ffn_residual_resident_kernel(%arg0: i32, %arg1: memref<8x32xf32, #tpu.memory_space<vmem>>, %arg2: memref<32x64xf32, #tpu.memory_space<vmem>>, %arg3: memref<1x64xf32, #tpu.memory_space<vmem>>, %arg4: memref<64x32xf32, #tpu.memory_space<vmem>>, %arg5: memref<1x32xf32, #tpu.memory_space<vmem>>, %arg6: memref<8x32xf32, #tpu.memory_space<vmem>>) attributes {dimension_semantics = [#tpu.dimension_semantics<parallel>], iteration_bounds = array<i64: 2>, scalar_prefetch = 0 : i64, scratch_operands = 0 : i64, tpu.core_type = #tpu.core_type<tc>, window_params = [{transform_indices = @transform_0, window_bounds = array<i64: 8, 32>}, {pipeline_mode = #tpu.pipeline_mode<synchronous>, transform_indices = @transform_1, window_bounds = array<i64: 32, 64>}, {pipeline_mode = #tpu.pipeline_mode<synchronous>, transform_indices = @transform_2, window_bounds = array<i64: 1, 64>}, {pipeline_mode = #tpu.pipeline_mode<synchronous>, transform_indices = @transform_3, window_bounds = array<i64: 64, 32>}, {pipeline_mode = #tpu.pipeline_mode<synchronous>, transform_indices = @transform_4, window_bounds = array<i64: 1, 32>}, {transform_indices = @transform_5, window_bounds = array<i64: 8, 32>}]} {
    %c0 = arith.constant 0 : index
    %c0_0 = arith.constant 0 : index
    %0 = vector.load %arg1[%c0, %c0_0] : memref<8x32xf32, #tpu.memory_space<vmem>>, vector<8x32xf32>
    %c0_1 = arith.constant 0 : index
    %c0_2 = arith.constant 0 : index
    %1 = vector.load %arg2[%c0_1, %c0_2] : memref<32x64xf32, #tpu.memory_space<vmem>>, vector<32x64xf32>
    %cst = arith.constant dense<0.000000e+00> : vector<8x64xf32>
    %2 = tpu.matmul %0, %1, %cst {dimension_numbers = #tpu.dot_dimension_numbers<[1], [0], [0], [1], [0, 0, 1, 1], [], []>} : vector<8x32xf32>, vector<32x64xf32>, vector<8x64xf32> -> vector<8x64xf32>
    %c0_3 = arith.constant 0 : index
    %c0_4 = arith.constant 0 : index
    %3 = vector.load %arg3[%c0_3, %c0_4] : memref<1x64xf32, #tpu.memory_space<vmem>>, vector<1x64xf32>
    %4 = vector.broadcast %3 : vector<1x64xf32> to vector<8x64xf32>
    %5 = arith.addf %2, %4 : vector<8x64xf32>
    %cst_5 = arith.constant 0.000000e+00 : f32
    %6 = vector.broadcast %cst_5 : f32 to vector<8x64xf32>
    %7 = arith.maximumf %5, %6 : vector<8x64xf32>
    %c0_6 = arith.constant 0 : index
    %c0_7 = arith.constant 0 : index
    %8 = vector.load %arg4[%c0_6, %c0_7] : memref<64x32xf32, #tpu.memory_space<vmem>>, vector<64x32xf32>
    %cst_8 = arith.constant dense<0.000000e+00> : vector<8x32xf32>
    %9 = tpu.matmul %7, %8, %cst_8 {dimension_numbers = #tpu.dot_dimension_numbers<[1], [0], [0], [1], [0, 0, 1, 1], [], []>} : vector<8x64xf32>, vector<64x32xf32>, vector<8x32xf32> -> vector<8x32xf32>
    %c0_9 = arith.constant 0 : index
    %c0_10 = arith.constant 0 : index
    %10 = vector.load %arg5[%c0_9, %c0_10] : memref<1x32xf32, #tpu.memory_space<vmem>>, vector<1x32xf32>
    %11 = vector.broadcast %10 : vector<1x32xf32> to vector<8x32xf32>
    %12 = arith.addf %9, %11 : vector<8x32xf32>
    %13 = arith.addf %12, %0 : vector<8x32xf32>
    %c0_11 = arith.constant 0 : index
    %c0_12 = arith.constant 0 : index
    %14 = vector.load %arg6[%c0_11, %c0_12] : memref<8x32xf32, #tpu.memory_space<vmem>>, vector<8x32xf32>
    tpu.vector_store %arg6[%c0_11, %c0_12], %13 {strides = array<i32>} : memref<8x32xf32, #tpu.memory_space<vmem>>, vector<8x32xf32>,
    return
  }
  func.func @transform_0(%arg0: i32) -> (i32, i32) {
    %c0_i32 = arith.constant 0 : i32
    %c0_i32_0 = arith.constant 0 : i32
    return %arg0, %c0_i32 : i32, i32
  }
  func.func @transform_1(%arg0: i32) -> (i32, i32) {
    %c0_i32 = arith.constant 0 : i32
    %c0_i32_0 = arith.constant 0 : i32
    %c0_i32_1 = arith.constant 0 : i32
    return %c0_i32, %c0_i32_0 : i32, i32
  }
  func.func @transform_2(%arg0: i32) -> (i32, i32) {
    %c0_i32 = arith.constant 0 : i32
    %c0_i32_0 = arith.constant 0 : i32
    %c0_i32_1 = arith.constant 0 : i32
    return %c0_i32, %c0_i32_0 : i32, i32
  }
  func.func @transform_3(%arg0: i32) -> (i32, i32) {
    %c0_i32 = arith.constant 0 : i32
    %c0_i32_0 = arith.constant 0 : i32
    %c0_i32_1 = arith.constant 0 : i32
    return %c0_i32, %c0_i32_0 : i32, i32
  }
  func.func @transform_4(%arg0: i32) -> (i32, i32) {
    %c0_i32 = arith.constant 0 : i32
    %c0_i32_0 = arith.constant 0 : i32
    %c0_i32_1 = arith.constant 0 : i32
    return %c0_i32, %c0_i32_0 : i32, i32
  }
  func.func @transform_5(%arg0: i32) -> (i32, i32) {
    %c0_i32 = arith.constant 0 : i32
    %c0_i32_0 = arith.constant 0 : i32
    return %arg0, %c0_i32 : i32, i32
  }
}

module attributes {stable_mosaic.version = 11 : i64} {
  func.func @_ffn_residual_resident_kernel(%arg0: i32, %arg1: memref<8x32xf32, #tpu.memory_space<vmem>>, %arg2: memref<32x64xf32, #tpu.memory_space<vmem>>, %arg3: memref<1x64xf32, #tpu.memory_space<vmem>>, %arg4: memref<64x32xf32, #tpu.memory_space<vmem>>, %arg5: memref<1x32xf32, #tpu.memory_space<vmem>>, %arg6: memref<8x32xf32, #tpu.memory_space<vmem>>) attributes {dimension_semantics = [#tpu.dimension_semantics<parallel>], iteration_bounds = array<i64: 2>, scalar_prefetch = 0 : i64, scratch_operands = 0 : i64, tpu.core_type = #tpu.core_type<tc>, window_params = [{transform_indices = @transform_0, window_bounds = array<i64: 8, 32>}, {pipeline_mode = #tpu.pipeline_mode<synchronous>, transform_indices = @transform_1, window_bounds = array<i64: 32, 64>}, {pipeline_mode = #tpu.pipeline_mode<synchronous>, transform_indices = @transform_2, window_bounds = array<i64: 1, 64>}, {pipeline_mode = #tpu.pipeline_mode<synchronous>, transform_indices = @transform_3, window_bounds = array<i64: 64, 32>}, {pipeline_mode = #tpu.pipeline_mode<synchronous>, transform_indices = @transform_4, window_bounds = array<i64: 1, 32>}, {transform_indices = @transform_5, window_bounds = array<i64: 8, 32>}]} {
    %c0 = arith.constant 0 : index
    %c0_0 = arith.constant 0 : index
    %0 = vector.load %arg1[%c0, %c0_0] : memref<8x32xf32, #tpu.memory_space<vmem>>, vector<8x32xf32>
    %c0_1 = arith.constant 0 : index
    %c0_2 = arith.constant 0 : index
    %1 = vector.load %arg2[%c0_1, %c0_2] : memref<32x64xf32, #tpu.memory_space<vmem>>, vector<32x64xf32>
    %cst = arith.constant dense<0.000000e+00> : vector<8x64xf32>
    %2 = tpu.matmul %0, %1, %cst {dimension_numbers = #tpu.dot_dimension_numbers<[1], [0], [0], [1], [0, 0, 1, 1], [], []>} : vector<8x32xf32>, vector<32x64xf32>, vector<8x64xf32> -> vector<8x64xf32>
    %c0_3 = arith.constant 0 : index
    %c0_4 = arith.constant 0 : index
    %3 = vector.load %arg3[%c0_3, %c0_4] : memref<1x64xf32, #tpu.memory_space<vmem>>, vector<1x64xf32>
    %4 = vector.broadcast %3 : vector<1x64xf32> to vector<8x64xf32>
    %5 = arith.addf %2, %4 : vector<8x64xf32>
    %cst_5 = arith.constant 0.000000e+00 : f32
    %6 = vector.broadcast %cst_5 : f32 to vector<8x64xf32>
    %7 = arith.maximumf %5, %6 : vector<8x64xf32>
    %c0_6 = arith.constant 0 : index
    %c0_7 = arith.constant 0 : index
    %8 = vector.load %arg4[%c0_6, %c0_7] : memref<64x32xf32, #tpu.memory_space<vmem>>, vector<64x32xf32>
    %cst_8 = arith.constant dense<0.000000e+00> : vector<8x32xf32>
    %9 = tpu.matmul %7, %8, %cst_8 {dimension_numbers = #tpu.dot_dimension_numbers<[1], [0], [0], [1], [0, 0, 1, 1], [], []>} : vector<8x64xf32>, vector<64x32xf32>, vector<8x32xf32> -> vector<8x32xf32>
    %c0_9 = arith.constant 0 : index
    %c0_10 = arith.constant 0 : index
    %10 = vector.load %arg5[%c0_9, %c0_10] : memref<1x32xf32, #tpu.memory_space<vmem>>, vector<1x32xf32>
    %11 = vector.broadcast %10 : vector<1x32xf32> to vector<8x32xf32>
    %12 = arith.addf %9, %11 : vector<8x32xf32>
    %13 = arith.addf %12, %0 : vector<8x32xf32>
    %c0_11 = arith.constant 0 : index
    %c0_12 = arith.constant 0 : index
    %14 = vector.load %arg6[%c0_11, %c0_12] : memref<8x32xf32, #tpu.memory_space<vmem>>, vector<8x32xf32>
    tpu.vector_store %arg6[%c0_11, %c0_12], %13 {strides = array<i32>} : memref<8x32xf32, #tpu.memory_space<vmem>>, vector<8x32xf32>,
    return
  }
  func.func @transform_0(%arg0: i32) -> (i32, i32) {
    %c0_i32 = arith.constant 0 : i32
    %c0_i32_0 = arith.constant 0 : i32
    return %arg0, %c0_i32 : i32, i32
  }
  func.func @transform_1(%arg0: i32) -> (i32, i32) {
    %c0_i32 = arith.constant 0 : i32
    %c0_i32_0 = arith.constant 0 : i32
    %c0_i32_1 = arith.constant 0 : i32
    return %c0_i32, %c0_i32_0 : i32, i32
  }
  func.func @transform_2(%arg0: i32) -> (i32, i32) {
    %c0_i32 = arith.constant 0 : i32
    %c0_i32_0 = arith.constant 0 : i32
    %c0_i32_1 = arith.constant 0 : i32
    return %c0_i32, %c0_i32_0 : i32, i32
  }
  func.func @transform_3(%arg0: i32) -> (i32, i32) {
    %c0_i32 = arith.constant 0 : i32
    %c0_i32_0 = arith.constant 0 : i32
    %c0_i32_1 = arith.constant 0 : i32
    return %c0_i32, %c0_i32_0 : i32, i32
  }
  func.func @transform_4(%arg0: i32) -> (i32, i32) {
    %c0_i32 = arith.constant 0 : i32
    %c0_i32_0 = arith.constant 0 : i32
    %c0_i32_1 = arith.constant 0 : i32
    return %c0_i32, %c0_i32_0 : i32, i32
  }
  func.func @transform_5(%arg0: i32) -> (i32, i32) {
    %c0_i32 = arith.constant 0 : i32
    %c0_i32_0 = arith.constant 0 : i32
    return %arg0, %c0_i32 : i32, i32
  }
}

</mosaic_0001>

<llo_original>
// kernel: tpu_custom_call.1
$region0: #{tpu_custom_call.1}
  #allocation0 [shape = 'u32[]', space=smem, size = 0x4, offset = 0x4, fixed_abs, tag = 'smem constant byte address 0x4 - core index']
  #allocation1 [shape = 'u32[72,128]{1,0:T(1,128)}', space=vmem, size = 0x9000, scoped, tag = 'internal scratch']
  %s0 = inlined_call_operand.vmem [shape: f32[16,32], index: 0, kind: input, shape index: {}]
  %s1 = inlined_call_operand.vmem [shape: f32[32,64], index: 1, kind: input, shape index: {}]
  %s2 = inlined_call_operand.vmem [shape: f32[1,64], index: 2, kind: input, shape index: {}]
  %s3 = inlined_call_operand.vmem [shape: f32[64,32], index: 3, kind: input, shape index: {}]
  %s4 = inlined_call_operand.vmem [shape: f32[1,32], index: 4, kind: input, shape index: {}]
  %s5 = inlined_call_operand.hbm [shape: f32[16,32], index: 5, kind: output, shape index: {}]
  %s6 = sld [smem:[#allocation0]]
  $region53: #{tpu_custom_call.1} parent=0
    _
  %s8 = ssub.s32 1, %s6
  %s9 = scalar_select 0, %s8, %s6
  $region1: #{tpu_custom_call.1} parent=0
    #allocation2 [shape = 'u8[8192]{0}', space=vmem, size = 0x2000, scoped, tag = 'output window, operand 0']
    #allocation3 [shape = 's32[2]{0}', space=sflag, size = 0x8, scoped, tag = 'scoped memory for tpu_custom_call.1']
    %10 = vsyncpa [#allocation3], 0
    %s11 = scalar_lea.sflag [#allocation3], 1
    %12 = vsyncpa %s11, 0
    loop: start=0, step=1, limit=4
    $region2: #{tpu_custom_call.1} parent=1 // loop_pre_header
      _
    $region3: #{tpu_custom_call.1} parent=1 // loop_header
      %s14 = sphi 0, %s18
      %p15 = scmp.ge.s32.totalorder %s14, 4
      %s24 = sphi 0, %s26
      %s27 = sphi 0, %s24
      %s28 = sphi 0, %s27
      %s44 = sphi 0, %s28
      %s48 = sphi 0, %s48
      %s50 = sphi 0, %s48
      %s51 = sphi 0, %s50
      %s65 = sphi 0, %s51
      %s69 = sphi 0, %s69
      %s71 = sphi 0, %s69
      %s72 = sphi 0, %s71
      %s86 = sphi 0, %s72
      %s90 = sphi 0, %s90
      %s92 = sphi 0, %s90
      %s93 = sphi 0, %s92
      %s107 = sphi 0, %s93
      %s111 = sphi 0, %s111
      %s113 = sphi 0, %s111
      %s114 = sphi 0, %s113
      %s128 = sphi 0, %s114
      %s134 = sphi 0, %s136
      %s137 = sphi 0, %s134
      %s138 = sphi 0, %s137
      %s154 = sphi 0, %s138
    $region4: #{tpu_custom_call.1} parent=1 // loop_header_branch
      %17 = sbr.rel (%p15) target = $region8
    $region5: #{tpu_custom_call.1} parent=1 // loop_body
      %s19 = ssub.s32 %s14, 1
      %s20 = ssub.s32 %s14, 2
      %s21 = sadd.s32 %s14, 1
      %s22 = ssub.s32 %s14, %s21
      %p23 = scmp.eq.s32.totalorder %s22, 0
      %s25 = sadd.s32 %s24, 1
      %s26 = scalar_select %p23, %s24, %s25
      %p29 = pneg %p23
      %p30 = scmp.eq.s32.totalorder %s14, 1
      %p31 = por %p29, %p30
      %p32 = scmp.ne.s32.totalorder %s24, %s27
      %p33 = scmp.eq.s32.totalorder %s14, 0
      %p34 = por %p32, %p33
      %p35 = scmp.ne.s32.totalorder %s24, %s27
      %p36 = scmp.eq.s32.totalorder %s19, 1
      %p37 = por %p35, %p36
      %p38 = scmp.ne.s32.totalorder %s27, %s28
      %p39 = scmp.eq.s32.totalorder %s19, 0
      %p40 = por %p38, %p39
      %p41 = scmp.ne.s32.totalorder %s27, %s28
      %p42 = scmp.eq.s32.totalorder %s20, 1
      %p43 = por %p41, %p42
      %p45 = scmp.ne.s32.totalorder %s28, %s44
      %p46 = scmp.eq.s32.totalorder %s20, 0
      %p47 = por %p45, %p46
      %s49 = sadd.s32 %s48, 1
      %p52 = scmp.eq.s32.totalorder %s14, 1
      %p53 = scmp.ne.s32.totalorder %s48, %s50
      %p54 = scmp.eq.s32.totalorder %s14, 0
      %p55 = por %p53, %p54
      %p56 = scmp.ne.s32.totalorder %s48, %s50
      %p57 = scmp.eq.s32.totalorder %s19, 1
      %p58 = por %p56, %p57
      %p59 = scmp.ne.s32.totalorder %s50, %s51
      %p60 = scmp.eq.s32.totalorder %s19, 0
      %p61 = por %p59, %p60
      %p62 = scmp.ne.s32.totalorder %s50, %s51
      %p63 = scmp.eq.s32.totalorder %s20, 1
      %p64 = por %p62, %p63
      %p66 = scmp.ne.s32.totalorder %s51, %s65
      %p67 = scmp.eq.s32.totalorder %s20, 0
      %p68 = por %p66, %p67
      %s70 = sadd.s32 %s69, 1
      %p73 = scmp.eq.s32.totalorder %s14, 1
      %p74 = scmp.ne.s32.totalorder %s69, %s71
      %p75 = scmp.eq.s32.totalorder %s14, 0
      %p76 = por %p74, %p75
      %p77 = scmp.ne.s32.totalorder %s69, %s71
      %p78 = scmp.eq.s32.totalorder %s19, 1
      %p79 = por %p77, %p78
      %p80 = scmp.ne.s32.totalorder %s71, %s72
      %p81 = scmp.eq.s32.totalorder %s19, 0
      %p82 = por %p80, %p81
      %p83 = scmp.ne.s32.totalorder %s71, %s72
      %p84 = scmp.eq.s32.totalorder %s20, 1
      %p85 = por %p83, %p84
      %p87 = scmp.ne.s32.totalorder %s72, %s86
      %p88 = scmp.eq.s32.totalorder %s20, 0
      %p89 = por %p87, %p88
      %s91 = sadd.s32 %s90, 1
      %p94 = scmp.eq.s32.totalorder %s14, 1
      %p95 = scmp.ne.s32.totalorder %s90, %s92
      %p96 = scmp.eq.s32.totalorder %s14, 0
      %p97 = por %p95, %p96
      %p98 = scmp.ne.s32.totalorder %s90, %s92
      %p99 = scmp.eq.s32.totalorder %s19, 1
      %p100 = por %p98, %p99
      %p101 = scmp.ne.s32.totalorder %s92, %s93
      %p102 = scmp.eq.s32.totalorder %s19, 0
      %p103 = por %p101, %p102
      %p104 = scmp.ne.s32.totalorder %s92, %s93
      %p105 = scmp.eq.s32.totalorder %s20, 1
      %p106 = por %p104, %p105
      %p108 = scmp.ne.s32.totalorder %s93, %s107
      %p109 = scmp.eq.s32.totalorder %s20, 0
      %p110 = por %p108, %p109
      %s112 = sadd.s32 %s111, 1
      %p115 = scmp.eq.s32.totalorder %s14, 1
      %p116 = scmp.ne.s32.totalorder %s111, %s113
      %p117 = scmp.eq.s32.totalorder %s14, 0
      %p118 = por %p116, %p117
      %p119 = scmp.ne.s32.totalorder %s111, %s113
      %p120 = scmp.eq.s32.totalorder %s19, 1
      %p121 = por %p119, %p120
      %p122 = scmp.ne.s32.totalorder %s113, %s114
      %p123 = scmp.eq.s32.totalorder %s19, 0
      %p124 = por %p122, %p123
      %p125 = scmp.ne.s32.totalorder %s113, %s114
      %p126 = scmp.eq.s32.totalorder %s20, 1
      %p127 = por %p125, %p126
      %p129 = scmp.ne.s32.totalorder %s114, %s128
      %p130 = scmp.eq.s32.totalorder %s20, 0
      %p131 = por %p129, %p130
      %s132 = ssub.s32 %s14, %s21
      %p133 = scmp.eq.s32.totalorder %s132, 0
      %s135 = sadd.s32 %s134, 1
      %s136 = scalar_select %p133, %s134, %s135
      %p139 = pneg %p133
      %p140 = scmp.eq.s32.totalorder %s14, 1
      %p141 = por %p139, %p140
      %p142 = scmp.ne.s32.totalorder %s134, %s137
      %p143 = scmp.eq.s32.totalorder %s14, 0
      %p144 = por %p142, %p143
      %p145 = scmp.ne.s32.totalorder %s134, %s137
      %p146 = scmp.eq.s32.totalorder %s19, 1
      %p147 = por %p145, %p146
      %p148 = scmp.ne.s32.totalorder %s137, %s138
      %p149 = scmp.eq.s32.totalorder %s19, 0
      %p150 = por %p148, %p149
      %p151 = scmp.ne.s32.totalorder %s137, %s138
      %p152 = scmp.eq.s32.totalorder %s20, 1
      %p153 = por %p151, %p152
      %p155 = scmp.ne.s32.totalorder %s138, %s154
      %p156 = scmp.eq.s32.totalorder %s20, 0
      %p157 = por %p155, %p156
      %p158 = scmp.le.s32.totalorder 1, %s14
      %p159 = scmp.lt.s32.totalorder %s14, 3
      %p160 = pnand %p158, %p159
      %p161 = pneg %p160
      // Predicated region
      $region9: #{tpu_custom_call.1} parent=5 // pred_check
        _
      $region10: #{tpu_custom_call.1} parent=5 // pred_check_branch
        %163 = sbr.rel (%p160) target = $region12
      $region11: #{tpu_custom_call.1} parent=5 // pred_region
        %s164 = ssub.s32 %s14, 1
        // Predicated region
        $region13: #{tpu_custom_call.1} parent=11 // pred_check
          %p165 = pneg %p61
        $region14: #{tpu_custom_call.1} parent=11 // pred_check_branch
          %167 = sbr.rel (%p165) target = $region16
        $region15: #{tpu_custom_call.1} parent=11 // pred_region
          _
        $region16: #{tpu_custom_call.1} parent=11 // pred_fallthru
          _
        // Predicated region
        $region17: #{tpu_custom_call.1} parent=11 // pred_check
          %p168 = pneg %p82
        $region18: #{tpu_custom_call.1} parent=11 // pred_check_branch
          %170 = sbr.rel (%p168) target = $region20
        $region19: #{tpu_custom_call.1} parent=11 // pred_region
          _
        $region20: #{tpu_custom_call.1} parent=11 // pred_fallthru
          _
        // Predicated region
        $region21: #{tpu_custom_call.1} parent=11 // pred_check
          %p171 = pneg %p103
        $region22: #{tpu_custom_call.1} parent=11 // pred_check_branch
          %173 = sbr.rel (%p171) target = $region24
        $region23: #{tpu_custom_call.1} parent=11 // pred_region
          _
        $region24: #{tpu_custom_call.1} parent=11 // pred_fallthru
          _
        // Predicated region
        $region25: #{tpu_custom_call.1} parent=11 // pred_check
          %p174 = pneg %p124
        $region26: #{tpu_custom_call.1} parent=11 // pred_check_branch
          %176 = sbr.rel (%p174) target = $region28
        $region27: #{tpu_custom_call.1} parent=11 // pred_region
          _
        $region28: #{tpu_custom_call.1} parent=11 // pred_fallthru
          _
      $region12: #{tpu_custom_call.1} parent=5 // pred_fallthru
        _
      %p177 = scmp.lt.s32.totalorder %s14, 2
      // Predicated region
      $region29: #{tpu_custom_call.1} parent=5 // pred_check
        %p178 = pneg %p177
      $region30: #{tpu_custom_call.1} parent=5 // pred_check_branch
        %180 = sbr.rel (%p178) target = $region32
      $region31: #{tpu_custom_call.1} parent=5 // pred_region
        // Predicated region
        $region33: #{tpu_custom_call.1} parent=31 // pred_check
          %p181 = pneg %p34
        $region34: #{tpu_custom_call.1} parent=31 // pred_check_branch
          %183 = sbr.rel (%p181) target = $region36
        $region35: #{tpu_custom_call.1} parent=31 // pred_region
          %p184 = scmp.lt.s32.totalorder %s14, 1
          %s185 = scalar_select %p184, %s14, 1
          %s186 = smul.addr %s185, 8
          %s187 = scalar_lea.vmem %s0, %s186
        $region36: #{tpu_custom_call.1} parent=31 // pred_fallthru
          _
      $region32: #{tpu_custom_call.1} parent=5 // pred_fallthru
        _
      %p188 = scmp.le.s32.totalorder 1, %s14
      %p189 = scmp.lt.s32.totalorder %s14, 3
      %p190 = pnand %p188, %p189
      %p191 = pneg %p190
      // Predicated region
      $region37: #{tpu_custom_call.1} parent=5 // pred_check
        _
      $region38: #{tpu_custom_call.1} parent=5 // pred_check_branch
        %193 = sbr.rel (%p190) target = $region40
      $region39: #{tpu_custom_call.1} parent=5 // pred_region
        %s194 = ssub.s32 %s14, 1
        %p195 = scmp.lt.s32.totalorder %s19, 1
        %s196 = scalar_select %p195, %s19, 1
        %s197 = smul.addr %s196, 8
        %s198 = scalar_lea.vmem %s0, %s197
        %p199 = pneg %p40
        %p200 = pneg %p37
        %p201 = pneg %p61
        %p202 = pneg %p58
        %p203 = pneg %p82
        %p204 = pneg %p79
        %p205 = pneg %p103
        %p206 = pneg %p100
        %p207 = pneg %p124
        %p208 = pneg %p121
        %p209 = pneg %p150
        %p210 = pneg %p147
        %s211 = sand.u32 %s137, 1
        %s212 = scalar_lea.sflag [#allocation3], %s211
        %s213 = sand.u32 %s137, 1
        %s214 = smul.addr %s213, 8
        %s215 = scalar_lea.vmem [#allocation2], %s214
        %p216 = scmp.lt.s32.totalorder %s19, 1
        %s217 = scalar_select %p216, %s19, 1
        %s218 = smul.addr %s217, 8
        %s219 = scalar_lea.vmem %s0, %s218
        %v220 = vld [vmem:[%s219] sm:$0xff]
        %v221 = vld [vmem:[%s1] sm:$0xff]
        %v222 = vld [vmem:[%s1 + $0x8] sm:$0xff]
        %v223 = vld [vmem:[%s1 + $0x10] sm:$0xff]
        %v224 = vld [vmem:[%s1 + $0x18] sm:$0xff]
        %v225 = vld [vmem:[%s2] sm:$0x1]
        %v227 = vperm.slane %v225, 0
        %vm229 = vcmask 261120
        %v231 = vsel %vm229, %v220, 0
        %233 = vmatpush.msra.mxu0 0.0
        %234 = vmatpush.msra.mxu0 0.0
        %235 = vmatpush.msra.mxu0 0.0
        %236 = vmatpush.msra.mxu0 0.0
        %237 = vmatpush.msra.mxu0 0.0
        %238 = vmatpush.msra.mxu0 0.0
        %239 = vmatpush.msra.mxu0 0.0
        %240 = vmatpush.msra.mxu0 0.0
        %241 = vmatpush.msra.mxu0 0.0
        %242 = vmatpush.msra.mxu0 0.0
        %243 = vmatpush.msra.mxu0 0.0
        %244 = vmatpush.msra.mxu0 0.0
        %245 = vmatpush.msra.mxu0 %v224
        %246 = vmatpush.msra.mxu0 %v223
        %247 = vmatpush.msra.mxu0 %v222
        %248 = vmatpush.msra.mxu0 %v221
        %249 = vmatmul.f32.gmra.mxu0 %v231
        %v250 = vpop.f32.mrf.mxu0
        %v251 = vadd.f32 %v227, %v250
        %252 = vdwg.mxu0
        %v253 = vmax.f32 %v251, 0.0
        %v254 = vld [vmem:[%s3] sm:$0xff]
        %v255 = vld [vmem:[%s3 + $0x8] sm:$0xff]
        %v256 = vld [vmem:[%s3 + $0x10] sm:$0xff]
        %v257 = vld [vmem:[%s3 + $0x18] sm:$0xff]
        %v258 = vld [vmem:[%s3 + $0x20] sm:$0xff]
        %v259 = vld [vmem:[%s3 + $0x28] sm:$0xff]
        %v260 = vld [vmem:[%s3 + $0x30] sm:$0xff]
        %v261 = vld [vmem:[%s3 + $0x38] sm:$0xff]
        %v262 = vld [vmem:[%s4] sm:$0x1]
        %v264 = vperm.slane %v262, 0
        %vm266 = vcmask 523264
        %v268 = vsel %vm266, %v253, 0
        %270 = vmatpush.msra.mxu0 0.0
        %271 = vmatpush.msra.mxu0 0.0
        %272 = vmatpush.msra.mxu0 0.0
        %273 = vmatpush.msra.mxu0 0.0
        %274 = vmatpush.msra.mxu0 0.0
        %275 = vmatpush.msra.mxu0 0.0
        %276 = vmatpush.msra.mxu0 0.0
        %277 = vmatpush.msra.mxu0 0.0
        %278 = vmatpush.msra.mxu0 %v261
        %279 = vmatpush.msra.mxu0 %v260
        %280 = vmatpush.msra.mxu0 %v259
        %281 = vmatpush.msra.mxu0 %v258
        %282 = vmatpush.msra.mxu0 %v257
        %283 = vmatpush.msra.mxu0 %v256
        %284 = vmatpush.msra.mxu0 %v255
        %285 = vmatpush.msra.mxu0 %v254
        %286 = vmatmul.f32.gmra.mxu0 %v268
        %v287 = vpop.f32.mrf.mxu0
        %v288 = vadd.f32 %v264, %v287
        %289 = vdwg.mxu0
        %v290 = vadd.f32 %v288, %v220
        %291 = vst.msk [vmem:[%s215] sm:$0xff] %vm229, %v290
        %s292 = sand.u32 %s137, 1
        %s293 = scalar_lea.sflag [#allocation3], %s292
        %s294 = sand.u32 %s137, 1
        %s295 = smul.addr %s294, 8
        %s296 = scalar_lea.vmem [#allocation2], %s295
        // Predicated region
        $region41: #{tpu_custom_call.1} parent=39 // pred_check
          %p297 = pneg %p147
        $region42: #{tpu_custom_call.1} parent=39 // pred_check_branch
          %299 = sbr.rel (%p297) target = $region44
        $region43: #{tpu_custom_call.1} parent=39 // pred_region
          %301 = vsyncadd %s293, 0
          %s302 = smul.addr %s19, 8
          %s303 = scalar_lea.hbm %s5, %s302
          %s305 = sshll.u32 %s296, 4
          %s306 = int_to_ptr.vmem [resolvable:$true] %s305
          %s307 = sshll.u32 %s303, 4
          %s308 = int_to_ptr.hbm [resolvable:$true] %s307
          %310 = dma.vmem_to_hbm [thread:$0]  %s306, 128, %s308, %s293
        $region44: #{tpu_custom_call.1} parent=39 // pred_fallthru
          _
      $region40: #{tpu_custom_call.1} parent=5 // pred_fallthru
        _
      %p311 = scmp.le.s32.totalorder 2, %s14
      // Predicated region
      $region45: #{tpu_custom_call.1} parent=5 // pred_check
        %p312 = pneg %p311
      $region46: #{tpu_custom_call.1} parent=5 // pred_check_branch
        %314 = sbr.rel (%p312) target = $region48
      $region47: #{tpu_custom_call.1} parent=5 // pred_region
        %s315 = ssub.s32 %s14, 2
        // Predicated region
        $region49: #{tpu_custom_call.1} parent=47 // pred_check
          %p316 = pneg %p153
        $region50: #{tpu_custom_call.1} parent=47 // pred_check_branch
          %318 = sbr.rel (%p316) target = $region52
        $region51: #{tpu_custom_call.1} parent=47 // pred_region
          %s319 = sand.u32 %s138, 1
          %s320 = scalar_lea.sflag [#allocation3], %s319
          %s321 = sand.u32 %s138, 1
          %s322 = smul.addr %s321, 8
          %s323 = scalar_lea.vmem [#allocation2], %s322
          %325 = dma.done %s320, 128
        $region52: #{tpu_custom_call.1} parent=47 // pred_fallthru
          _
      $region48: #{tpu_custom_call.1} parent=5 // pred_fallthru
        _
    $region6: #{tpu_custom_call.1} parent=1 // loop_footer
      %s18 = sadd.s32 1, %s14
    $region7: #{tpu_custom_call.1} parent=1 // loop_footer_branch
      %13 = sbr.rel target = $region3
    $region8: #{tpu_custom_call.1} parent=1 // loop_exit
      _
    %326 = vsyncpa [#allocation3], 1
    %s327 = scalar_lea.sflag [#allocation3], 1
    %328 = vsyncpa %s327, 1

// kernel: tpu_custom_call.1
$region0: #{tpu_custom_call.1}
  #allocation0 [shape = 'u32[]', space=smem, size = 0x4, offset = 0x4, fixed_abs, tag = 'smem constant byte address 0x4 - core index']
  #allocation1 [shape = 'u32[72,128]{1,0:T(1,128)}', space=vmem, size = 0x9000, scoped, tag = 'internal scratch']
  %s0 = inlined_call_operand.vmem [shape: f32[16,32], index: 0, kind: input, shape index: {}]
  %s1 = inlined_call_operand.vmem [shape: f32[32,64], index: 1, kind: input, shape index: {}]
  %s2 = inlined_call_operand.vmem [shape: f32[1,64], index: 2, kind: input, shape index: {}]
  %s3 = inlined_call_operand.vmem [shape: f32[64,32], index: 3, kind: input, shape index: {}]
  %s4 = inlined_call_operand.vmem [shape: f32[1,32], index: 4, kind: input, shape index: {}]
  %s5 = inlined_call_operand.hbm [shape: f32[16,32], index: 5, kind: output, shape index: {}]
  %s6 = sld [smem:[#allocation0]]
  $region53: #{tpu_custom_call.1} parent=0
    _
  %s8 = ssub.s32 1, %s6
  %s9 = scalar_select 0, %s8, %s6
  $region1: #{tpu_custom_call.1} parent=0
    #allocation2 [shape = 'u8[8192]{0}', space=vmem, size = 0x2000, scoped, tag = 'output window, operand 0']
    #allocation3 [shape = 's32[2]{0}', space=sflag, size = 0x8, scoped, tag = 'scoped memory for tpu_custom_call.1']
    %10 = vsyncpa [#allocation3], 0
    %s11 = scalar_lea.sflag [#allocation3], 1
    %12 = vsyncpa %s11, 0
    loop: start=0, step=1, limit=4
    $region2: #{tpu_custom_call.1} parent=1 // loop_pre_header
      _
    $region3: #{tpu_custom_call.1} parent=1 // loop_header
      %s14 = sphi 0, %s18
      %p15 = scmp.ge.s32.totalorder %s14, 4
      %s24 = sphi 0, %s26
      %s27 = sphi 0, %s24
      %s28 = sphi 0, %s27
      %s44 = sphi 0, %s28
      %s48 = sphi 0, %s48
      %s50 = sphi 0, %s48
      %s51 = sphi 0, %s50
      %s65 = sphi 0, %s51
      %s69 = sphi 0, %s69
      %s71 = sphi 0, %s69
      %s72 = sphi 0, %s71
      %s86 = sphi 0, %s72
      %s90 = sphi 0, %s90
      %s92 = sphi 0, %s90
      %s93 = sphi 0, %s92
      %s107 = sphi 0, %s93
      %s111 = sphi 0, %s111
      %s113 = sphi 0, %s111
      %s114 = sphi 0, %s113
      %s128 = sphi 0, %s114
      %s134 = sphi 0, %s136
      %s137 = sphi 0, %s134
      %s138 = sphi 0, %s137
      %s154 = sphi 0, %s138
    $region4: #{tpu_custom_call.1} parent=1 // loop_header_branch
      %17 = sbr.rel (%p15) target = $region8
    $region5: #{tpu_custom_call.1} parent=1 // loop_body
      %s19 = ssub.s32 %s14, 1
      %s20 = ssub.s32 %s14, 2
      %s21 = sadd.s32 %s14, 1
      %s22 = ssub.s32 %s14, %s21
      %p23 = scmp.eq.s32.totalorder %s22, 0
      %s25 = sadd.s32 %s24, 1
      %s26 = scalar_select %p23, %s24, %s25
      %p29 = pneg %p23
      %p30 = scmp.eq.s32.totalorder %s14, 1
      %p31 = por %p29, %p30
      %p32 = scmp.ne.s32.totalorder %s24, %s27
      %p33 = scmp.eq.s32.totalorder %s14, 0
      %p34 = por %p32, %p33
      %p35 = scmp.ne.s32.totalorder %s24, %s27
      %p36 = scmp.eq.s32.totalorder %s19, 1
      %p37 = por %p35, %p36
      %p38 = scmp.ne.s32.totalorder %s27, %s28
      %p39 = scmp.eq.s32.totalorder %s19, 0
      %p40 = por %p38, %p39
      %p41 = scmp.ne.s32.totalorder %s27, %s28
      %p42 = scmp.eq.s32.totalorder %s20, 1
      %p43 = por %p41, %p42
      %p45 = scmp.ne.s32.totalorder %s28, %s44
      %p46 = scmp.eq.s32.totalorder %s20, 0
      %p47 = por %p45, %p46
      %s49 = sadd.s32 %s48, 1
      %p52 = scmp.eq.s32.totalorder %s14, 1
      %p53 = scmp.ne.s32.totalorder %s48, %s50
      %p54 = scmp.eq.s32.totalorder %s14, 0
      %p55 = por %p53, %p54
      %p56 = scmp.ne.s32.totalorder %s48, %s50
      %p57 = scmp.eq.s32.totalorder %s19, 1
      %p58 = por %p56, %p57
      %p59 = scmp.ne.s32.totalorder %s50, %s51
      %p60 = scmp.eq.s32.totalorder %s19, 0
      %p61 = por %p59, %p60
      %p62 = scmp.ne.s32.totalorder %s50, %s51
      %p63 = scmp.eq.s32.totalorder %s20, 1
      %p64 = por %p62, %p63
      %p66 = scmp.ne.s32.totalorder %s51, %s65
      %p67 = scmp.eq.s32.totalorder %s20, 0
      %p68 = por %p66, %p67
      %s70 = sadd.s32 %s69, 1
      %p73 = scmp.eq.s32.totalorder %s14, 1
      %p74 = scmp.ne.s32.totalorder %s69, %s71
      %p75 = scmp.eq.s32.totalorder %s14, 0
      %p76 = por %p74, %p75
      %p77 = scmp.ne.s32.totalorder %s69, %s71
      %p78 = scmp.eq.s32.totalorder %s19, 1
      %p79 = por %p77, %p78
      %p80 = scmp.ne.s32.totalorder %s71, %s72
      %p81 = scmp.eq.s32.totalorder %s19, 0
      %p82 = por %p80, %p81
      %p83 = scmp.ne.s32.totalorder %s71, %s72
      %p84 = scmp.eq.s32.totalorder %s20, 1
      %p85 = por %p83, %p84
      %p87 = scmp.ne.s32.totalorder %s72, %s86
      %p88 = scmp.eq.s32.totalorder %s20, 0
      %p89 = por %p87, %p88
      %s91 = sadd.s32 %s90, 1
      %p94 = scmp.eq.s32.totalorder %s14, 1
      %p95 = scmp.ne.s32.totalorder %s90, %s92
      %p96 = scmp.eq.s32.totalorder %s14, 0
      %p97 = por %p95, %p96
      %p98 = scmp.ne.s32.totalorder %s90, %s92
      %p99 = scmp.eq.s32.totalorder %s19, 1
      %p100 = por %p98, %p99
      %p101 = scmp.ne.s32.totalorder %s92, %s93
      %p102 = scmp.eq.s32.totalorder %s19, 0
      %p103 = por %p101, %p102
      %p104 = scmp.ne.s32.totalorder %s92, %s93
      %p105 = scmp.eq.s32.totalorder %s20, 1
      %p106 = por %p104, %p105
      %p108 = scmp.ne.s32.totalorder %s93, %s107
      %p109 = scmp.eq.s32.totalorder %s20, 0
      %p110 = por %p108, %p109
      %s112 = sadd.s32 %s111, 1
      %p115 = scmp.eq.s32.totalorder %s14, 1
      %p116 = scmp.ne.s32.totalorder %s111, %s113
      %p117 = scmp.eq.s32.totalorder %s14, 0
      %p118 = por %p116, %p117
      %p119 = scmp.ne.s32.totalorder %s111, %s113
      %p120 = scmp.eq.s32.totalorder %s19, 1
      %p121 = por %p119, %p120
      %p122 = scmp.ne.s32.totalorder %s113, %s114
      %p123 = scmp.eq.s32.totalorder %s19, 0
      %p124 = por %p122, %p123
      %p125 = scmp.ne.s32.totalorder %s113, %s114
      %p126 = scmp.eq.s32.totalorder %s20, 1
      %p127 = por %p125, %p126
      %p129 = scmp.ne.s32.totalorder %s114, %s128
      %p130 = scmp.eq.s32.totalorder %s20, 0
      %p131 = por %p129, %p130
      %s132 = ssub.s32 %s14, %s21
      %p133 = scmp.eq.s32.totalorder %s132, 0
      %s135 = sadd.s32 %s134, 1
      %s136 = scalar_select %p133, %s134, %s135
      %p139 = pneg %p133
      %p140 = scmp.eq.s32.totalorder %s14, 1
      %p141 = por %p139, %p140
      %p142 = scmp.ne.s32.totalorder %s134, %s137
      %p143 = scmp.eq.s32.totalorder %s14, 0
      %p144 = por %p142, %p143
      %p145 = scmp.ne.s32.totalorder %s134, %s137
      %p146 = scmp.eq.s32.totalorder %s19, 1
      %p147 = por %p145, %p146
      %p148 = scmp.ne.s32.totalorder %s137, %s138
      %p149 = scmp.eq.s32.totalorder %s19, 0
      %p150 = por %p148, %p149
      %p151 = scmp.ne.s32.totalorder %s137, %s138
      %p152 = scmp.eq.s32.totalorder %s20, 1
      %p153 = por %p151, %p152
      %p155 = scmp.ne.s32.totalorder %s138, %s154
      %p156 = scmp.eq.s32.totalorder %s20, 0
      %p157 = por %p155, %p156
      %p158 = scmp.le.s32.totalorder 1, %s14
      %p159 = scmp.lt.s32.totalorder %s14, 3
      %p160 = pnand %p158, %p159
      %p161 = pneg %p160
      // Predicated region
      $region9: #{tpu_custom_call.1} parent=5 // pred_check
        _
      $region10: #{tpu_custom_call.1} parent=5 // pred_check_branch
        %163 = sbr.rel (%p160) target = $region12
      $region11: #{tpu_custom_call.1} parent=5 // pred_region
        %s164 = ssub.s32 %s14, 1
        // Predicated region
        $region13: #{tpu_custom_call.1} parent=11 // pred_check
          %p165 = pneg %p61
        $region14: #{tpu_custom_call.1} parent=11 // pred_check_branch
          %167 = sbr.rel (%p165) target = $region16
        $region15: #{tpu_custom_call.1} parent=11 // pred_region
          _
        $region16: #{tpu_custom_call.1} parent=11 // pred_fallthru
          _
        // Predicated region
        $region17: #{tpu_custom_call.1} parent=11 // pred_check
          %p168 = pneg %p82
        $region18: #{tpu_custom_call.1} parent=11 // pred_check_branch
          %170 = sbr.rel (%p168) target = $region20
        $region19: #{tpu_custom_call.1} parent=11 // pred_region
          _
        $region20: #{tpu_custom_call.1} parent=11 // pred_fallthru
          _
        // Predicated region
        $region21: #{tpu_custom_call.1} parent=11 // pred_check
          %p171 = pneg %p103
        $region22: #{tpu_custom_call.1} parent=11 // pred_check_branch
          %173 = sbr.rel (%p171) target = $region24
        $region23: #{tpu_custom_call.1} parent=11 // pred_region
          _
        $region24: #{tpu_custom_call.1} parent=11 // pred_fallthru
          _
        // Predicated region
        $region25: #{tpu_custom_call.1} parent=11 // pred_check
          %p174 = pneg %p124
        $region26: #{tpu_custom_call.1} parent=11 // pred_check_branch
          %176 = sbr.rel (%p174) target = $region28
        $region27: #{tpu_custom_call.1} parent=11 // pred_region
          _
        $region28: #{tpu_custom_call.1} parent=11 // pred_fallthru
          _
      $region12: #{tpu_custom_call.1} parent=5 // pred_fallthru
        _
      %p177 = scmp.lt.s32.totalorder %s14, 2
      // Predicated region
      $region29: #{tpu_custom_call.1} parent=5 // pred_check
        %p178 = pneg %p177
      $region30: #{tpu_custom_call.1} parent=5 // pred_check_branch
        %180 = sbr.rel (%p178) target = $region32
      $region31: #{tpu_custom_call.1} parent=5 // pred_region
        // Predicated region
        $region33: #{tpu_custom_call.1} parent=31 // pred_check
          %p181 = pneg %p34
        $region34: #{tpu_custom_call.1} parent=31 // pred_check_branch
          %183 = sbr.rel (%p181) target = $region36
        $region35: #{tpu_custom_call.1} parent=31 // pred_region
          %p184 = scmp.lt.s32.totalorder %s14, 1
          %s185 = scalar_select %p184, %s14, 1
          %s186 = smul.addr %s185, 8
          %s187 = scalar_lea.vmem %s0, %s186
        $region36: #{tpu_custom_call.1} parent=31 // pred_fallthru
          _
      $region32: #{tpu_custom_call.1} parent=5 // pred_fallthru
        _
      %p188 = scmp.le.s32.totalorder 1, %s14
      %p189 = scmp.lt.s32.totalorder %s14, 3
      %p190 = pnand %p188, %p189
      %p191 = pneg %p190
      // Predicated region
      $region37: #{tpu_custom_call.1} parent=5 // pred_check
        _
      $region38: #{tpu_custom_call.1} parent=5 // pred_check_branch
        %193 = sbr.rel (%p190) target = $region40
      $region39: #{tpu_custom_call.1} parent=5 // pred_region
        %s194 = ssub.s32 %s14, 1
        %p195 = scmp.lt.s32.totalorder %s19, 1
        %s196 = scalar_select %p195, %s19, 1
        %s197 = smul.addr %s196, 8
        %s198 = scalar_lea.vmem %s0, %s197
        %p199 = pneg %p40
        %p200 = pneg %p37
        %p201 = pneg %p61
        %p202 = pneg %p58
        %p203 = pneg %p82
        %p204 = pneg %p79
        %p205 = pneg %p103
        %p206 = pneg %p100
        %p207 = pneg %p124
        %p208 = pneg %p121
        %p209 = pneg %p150
        %p210 = pneg %p147
        %s211 = sand.u32 %s137, 1
        %s212 = scalar_lea.sflag [#allocation3], %s211
        %s213 = sand.u32 %s137, 1
        %s214 = smul.addr %s213, 8
        %s215 = scalar_lea.vmem [#allocation2], %s214
        %p216 = scmp.lt.s32.totalorder %s19, 1
        %s217 = scalar_select %p216, %s19, 1
        %s218 = smul.addr %s217, 8
        %s219 = scalar_lea.vmem %s0, %s218
        %v220 = vld [vmem:[%s219] sm:$0xff]
        %v221 = vld [vmem:[%s1] sm:$0xff]
        %v222 = vld [vmem:[%s1 + $0x8] sm:$0xff]
        %v223 = vld [vmem:[%s1 + $0x10] sm:$0xff]
        %v224 = vld [vmem:[%s1 + $0x18] sm:$0xff]
        %v225 = vld [vmem:[%s2] sm:$0x1]
        %v227 = vperm.slane %v225, 0
        %vm229 = vcmask 261120
        %v231 = vsel %vm229, %v220, 0
        %233 = vmatpush.msra.mxu0 0.0
        %234 = vmatpush.msra.mxu0 0.0
        %235 = vmatpush.msra.mxu0 0.0
        %236 = vmatpush.msra.mxu0 0.0
        %237 = vmatpush.msra.mxu0 0.0
        %238 = vmatpush.msra.mxu0 0.0
        %239 = vmatpush.msra.mxu0 0.0
        %240 = vmatpush.msra.mxu0 0.0
        %241 = vmatpush.msra.mxu0 0.0
        %242 = vmatpush.msra.mxu0 0.0
        %243 = vmatpush.msra.mxu0 0.0
        %244 = vmatpush.msra.mxu0 0.0
        %245 = vmatpush.msra.mxu0 %v224
        %246 = vmatpush.msra.mxu0 %v223
        %247 = vmatpush.msra.mxu0 %v222
        %248 = vmatpush.msra.mxu0 %v221
        %249 = vmatmul.f32.gmra.mxu0 %v231
        %v250 = vpop.f32.mrf.mxu0
        %v251 = vadd.f32 %v227, %v250
        %252 = vdwg.mxu0
        %v253 = vmax.f32 %v251, 0.0
        %v254 = vld [vmem:[%s3] sm:$0xff]
        %v255 = vld [vmem:[%s3 + $0x8] sm:$0xff]
        %v256 = vld [vmem:[%s3 + $0x10] sm:$0xff]
        %v257 = vld [vmem:[%s3 + $0x18] sm:$0xff]
        %v258 = vld [vmem:[%s3 + $0x20] sm:$0xff]
        %v259 = vld [vmem:[%s3 + $0x28] sm:$0xff]
        %v260 = vld [vmem:[%s3 + $0x30] sm:$0xff]
        %v261 = vld [vmem:[%s3 + $0x38] sm:$0xff]
        %v262 = vld [vmem:[%s4] sm:$0x1]
        %v264 = vperm.slane %v262, 0
        %vm266 = vcmask 523264
        %v268 = vsel %vm266, %v253, 0
        %270 = vmatpush.msra.mxu0 0.0
        %271 = vmatpush.msra.mxu0 0.0
        %272 = vmatpush.msra.mxu0 0.0
        %273 = vmatpush.msra.mxu0 0.0
        %274 = vmatpush.msra.mxu0 0.0
        %275 = vmatpush.msra.mxu0 0.0
        %276 = vmatpush.msra.mxu0 0.0
        %277 = vmatpush.msra.mxu0 0.0
        %278 = vmatpush.msra.mxu0 %v261
        %279 = vmatpush.msra.mxu0 %v260
        %280 = vmatpush.msra.mxu0 %v259
        %281 = vmatpush.msra.mxu0 %v258
        %282 = vmatpush.msra.mxu0 %v257
        %283 = vmatpush.msra.mxu0 %v256
        %284 = vmatpush.msra.mxu0 %v255
        %285 = vmatpush.msra.mxu0 %v254
        %286 = vmatmul.f32.gmra.mxu0 %v268
        %v287 = vpop.f32.mrf.mxu0
        %v288 = vadd.f32 %v264, %v287
        %289 = vdwg.mxu0
        %v290 = vadd.f32 %v288, %v220
        %291 = vst.msk [vmem:[%s215] sm:$0xff] %vm229, %v290
        %s292 = sand.u32 %s137, 1
        %s293 = scalar_lea.sflag [#allocation3], %s292
        %s294 = sand.u32 %s137, 1
        %s295 = smul.addr %s294, 8
        %s296 = scalar_lea.vmem [#allocation2], %s295
        // Predicated region
        $region41: #{tpu_custom_call.1} parent=39 // pred_check
          %p297 = pneg %p147
        $region42: #{tpu_custom_call.1} parent=39 // pred_check_branch
          %299 = sbr.rel (%p297) target = $region44
        $region43: #{tpu_custom_call.1} parent=39 // pred_region
          %301 = vsyncadd %s293, 0
          %s302 = smul.addr %s19, 8
          %s303 = scalar_lea.hbm %s5, %s302
          %s305 = sshll.u32 %s296, 4
          %s306 = int_to_ptr.vmem [resolvable:$true] %s305
          %s307 = sshll.u32 %s303, 4
          %s308 = int_to_ptr.hbm [resolvable:$true] %s307
          %310 = dma.vmem_to_hbm [thread:$0]  %s306, 128, %s308, %s293
        $region44: #{tpu_custom_call.1} parent=39 // pred_fallthru
          _
      $region40: #{tpu_custom_call.1} parent=5 // pred_fallthru
        _
      %p311 = scmp.le.s32.totalorder 2, %s14
      // Predicated region
      $region45: #{tpu_custom_call.1} parent=5 // pred_check
        %p312 = pneg %p311
      $region46: #{tpu_custom_call.1} parent=5 // pred_check_branch
        %314 = sbr.rel (%p312) target = $region48
      $region47: #{tpu_custom_call.1} parent=5 // pred_region
        %s315 = ssub.s32 %s14, 2
        // Predicated region
        $region49: #{tpu_custom_call.1} parent=47 // pred_check
          %p316 = pneg %p153
        $region50: #{tpu_custom_call.1} parent=47 // pred_check_branch
          %318 = sbr.rel (%p316) target = $region52
        $region51: #{tpu_custom_call.1} parent=47 // pred_region
          %s319 = sand.u32 %s138, 1
          %s320 = scalar_lea.sflag [#allocation3], %s319
          %s321 = sand.u32 %s138, 1
          %s322 = smul.addr %s321, 8
          %s323 = scalar_lea.vmem [#allocation2], %s322
          %325 = dma.done %s320, 128
        $region52: #{tpu_custom_call.1} parent=47 // pred_fallthru
          _
      $region48: #{tpu_custom_call.1} parent=5 // pred_fallthru
        _
    $region6: #{tpu_custom_call.1} parent=1 // loop_footer
      %s18 = sadd.s32 1, %s14
    $region7: #{tpu_custom_call.1} parent=1 // loop_footer_branch
      %13 = sbr.rel target = $region3
    $region8: #{tpu_custom_call.1} parent=1 // loop_exit
      _
    %326 = vsyncpa [#allocation3], 1
    %s327 = scalar_lea.sflag [#allocation3], 1
    %328 = vsyncpa %s327, 1

</llo_original>
